<compile_context>
chip_gen: v5e
topology: v5e:2x2
jax: 0.10.0
libtpu: 0.0.40
codegen_flags: <defaults>
</compile_context>

<pallas_src>
import functools

import jax
import jax.numpy as jnp
from jax.experimental import pallas as pl
from jax.experimental.pallas import tpu as pltpu


_LANE = 128                       # TPU lane width (last-dim tiling unit)
_PER_TC_VMEM = 64 * 1024 * 1024   # v7x per-TensorCore VMEM; conservative clamp
_VMEM_LIMIT_CAP = 48 * 1024 * 1024


def _layernorm_kernel(x_ref, alpha_ref, bias_ref, o_ref, *, eps: float, features: int):
    # x_ref: (rt, Fp); alpha_ref / bias_ref: (1, Fp) float32 (pre-cast, pre-padded)
    fp = x_ref.shape[-1]
    x = x_ref[...].astype(jnp.float32)

    # Padded lanes (if any) hold zeros -> sum over the padded axis is already
    # the sum over the real `features` columns.
    mean = jnp.sum(x, axis=-1, keepdims=True) * jnp.float32(1.0 / features)

    # Unbiased (ddof=1) variance, numerically-safe two-pass form.  `d` is only
    # live through the sum-of-squares; the output expression recomputes
    # (x - mean) so no full (rt, Fp) f32 temporary stays resident in the tail.
    if fp == features:
        d = x - mean
    else:
        lane = jax.lax.broadcasted_iota(jnp.int32, (1, fp), 1)
        d = jnp.where(lane < features, x - mean, jnp.float32(0.0))
    var = jnp.sum(d * d, axis=-1, keepdims=True) * jnp.float32(1.0 / (features - 1))
    denom = jnp.sqrt(var) + jnp.float32(eps)            # (rt, 1)

    # EUP approximate reciprocal (separate VLIW slot) + one Newton-Raphson step
    # for ~1 ulp accuracy; avoids rt*Fp per-element f32 divides on the VPU.
    inv = pl.reciprocal(denom, approx=True)
    inv = inv * (jnp.float32(2.0) - denom * inv)

    # alpha/bias padded lanes are zero -> padded output lanes are exactly 0 and
    # get sliced off in the wrapper.
    y = ((x - mean) * inv) * alpha_ref[...] + bias_ref[...]
    o_ref[...] = y.astype(o_ref.dtype)


def _vmem_capacity_bytes() -> int:
    try:
        cap = int(pltpu.get_tpu_info().vmem_capacity_bytes)
    except Exception:
        cap = _PER_TC_VMEM
    # Clamp to the per-TensorCore figure: with dimension_semantics=("parallel",)
    # both v7x TCs run tiles concurrently, each out of its own 64 MiB VMEM, and
    # get_tpu_info() may report a per-chip number.
    return min(cap, _PER_TC_VMEM)


def layer_normalization(x, alpha, bias, *, eps: float = 1e-6, row_tile=None):
    """LayerNormalization forward. x: (..., features)."""
    orig_shape = x.shape
    features = int(orig_shape[-1])
    if features < 2:
        raise ValueError(
            "LayerNormalization with torch-style unbiased std requires features >= 2")

    rows = 1
    for d in orig_shape[:-1]:
        rows *= int(d)

    # --- lane-dense feature axis -------------------------------------------
    # Pad features up to a multiple of 128 so output stores are unmasked vst.
    # alpha/bias padded with zeros -> padded output lanes are exactly zero.
    f_pad = ((features + _LANE - 1) // _LANE) * _LANE
    x2d = x.reshape(rows, features)
    alpha32 = alpha.reshape(1, features).astype(jnp.float32)
    bias32 = bias.reshape(1, features).astype(jnp.float32)
    if f_pad != features:
        pad = f_pad - features
        x2d = jnp.pad(x2d, ((0, 0), (0, pad)))
        alpha32 = jnp.pad(alpha32, ((0, 0), (0, pad)))
        bias32 = jnp.pad(bias32, ((0, 0), (0, pad)))

    itemsize = jnp.dtype(x.dtype).itemsize
    sublane = 16 if itemsize == 2 else 8   # sub-32-bit dtypes pack along sublanes

    vmem_cap = _vmem_capacity_bytes()
    # Per tile row: double-buffered in + out tiles in the native dtype
    # (4 * itemsize) plus ~3 full-tile f32 temporaries inside the kernel
    # (x cast to f32, centered diff, y).
    per_row_bytes = (4 * itemsize + 3 * 4) * f_pad

    if row_tile is None:
        budget = vmem_cap // 2
        if per_row_bytes * sublane > budget:
            # TODO(synk): for very large `features`, chunk the feature axis with
            # a 2-D grid + partial-sum pass instead of failing here.
            raise ValueError(
                f"features={features} is too large for a single-row-tile "
                f"LayerNorm kernel within a {budget}-byte VMEM budget")
        rt = budget // per_row_bytes
        rt = max(sublane, min(1024, (rt // sublane) * sublane))
    else:
        rt = max(sublane, (int(row_tile) // sublane) * sublane)

    # Keep at least ~8 blocks in the grid (when rows allow) so both v7x
    # TensorCores get balanced work; harmless on single-TC parts.
    target_blocks = 8
    rt_parallel = -(-rows // target_blocks)                               # cdiv
    rt_parallel = max(sublane, ((rt_parallel + sublane - 1) // sublane) * sublane)
    rt = min(rt, rt_parallel)

    grid = (pl.cdiv(rows, rt),)   # Pallas masks the ragged last block

    # Explicit scoped-VMEM limit: double-buffered tiles + f32 temporaries +
    # double-buffered params, plus headroom, capped megacore-safe at 48 MiB.
    tile_bytes = rt * f_pad * itemsize
    temps_bytes = 3 * 4 * rt * f_pad
    param_bytes = 2 * 2 * f_pad * 4
    needed = 4 * tile_bytes + temps_bytes + param_bytes
    vmem_limit = int(min(_VMEM_LIMIT_CAP, max(needed + (8 << 20), 32 << 20)))

    out2d = pl.pallas_call(
        functools.partial(_layernorm_kernel, eps=eps, features=features),
        out_shape=jax.ShapeDtypeStruct((rows, f_pad), x.dtype),
        grid_spec=pltpu.PrefetchScalarGridSpec(
            num_scalar_prefetch=0,
            grid=grid,
            in_specs=[
                pl.BlockSpec((rt, f_pad), lambda i: (i, 0)),
                pl.BlockSpec((1, f_pad), lambda i: (0, 0)),
                pl.BlockSpec((1, f_pad), lambda i: (0, 0)),
            ],
            out_specs=pl.BlockSpec((rt, f_pad), lambda i: (i, 0)),
        ),
        compiler_params=pltpu.CompilerParams(
            dimension_semantics=("parallel",),   # megacore-shards rows on v7x
            vmem_limit_bytes=vmem_limit,
        ),
    )(x2d, alpha32, bias32)

    if f_pad != features:
        out2d = out2d[:, :features]
    return out2d.reshape(orig_shape)


if __name__ == "__main__":
    # Small shapes consistent with transformer usage: (batch, seq, hidden).
    batch, seq, hidden = 2, 8, 32

    key = jax.random.PRNGKey(0)
    x = jax.random.normal(key, (batch, seq, hidden), dtype=jnp.float32)

    # Matches nn.Parameter(torch.ones(features)) / torch.zeros(features).
    alpha = jnp.ones((hidden,), dtype=jnp.float32)
    bias = jnp.zeros((hidden,), dtype=jnp.float32)

    out = layer_normalization(x, alpha, bias, eps=1e-6)
    out = jax.block_until_ready(out)

    # Reference check in plain JAX (unbiased std, eps added to std).
    mean = jnp.mean(x, axis=-1, keepdims=True)
    std = jnp.sqrt(jnp.sum((x - mean) ** 2, axis=-1, keepdims=True) / (hidden - 1))
    ref = alpha * (x - mean) / (std + 1e-6) + bias
    assert jnp.allclose(out, ref, atol=1e-5, rtol=1e-5), "mismatch vs reference"

    print("KERNEL_OK")
</pallas_src>

<mosaic_0001>
module attributes {stable_mosaic.version = 11 : i64} {
  func.func @_layernorm_kernel(%arg0: i32, %arg1: memref<8x128xf32, #tpu.memory_space<vmem>>, %arg2: memref<1x128xf32, #tpu.memory_space<vmem>>, %arg3: memref<1x128xf32, #tpu.memory_space<vmem>>, %arg4: memref<8x128xf32, #tpu.memory_space<vmem>>) attributes {dimension_semantics = [#tpu.dimension_semantics<parallel>], iteration_bounds = array<i64: 2>, scalar_prefetch = 0 : i64, scratch_operands = 0 : i64, tpu.core_type = #tpu.core_type<tc>, window_params = [{transform_indices = @transform_0, window_bounds = array<i64: 8, 128>}, {pipeline_mode = #tpu.pipeline_mode<synchronous>, transform_indices = @transform_1, window_bounds = array<i64: 1, 128>}, {pipeline_mode = #tpu.pipeline_mode<synchronous>, transform_indices = @transform_2, window_bounds = array<i64: 1, 128>}, {transform_indices = @transform_3, window_bounds = array<i64: 8, 128>}]} {
    %c0 = arith.constant 0 : index
    %c0_0 = arith.constant 0 : index
    %0 = vector.load %arg1[%c0, %c0_0] : memref<8x128xf32, #tpu.memory_space<vmem>>, vector<8x128xf32>
    %cst = arith.constant dense<0.000000e+00> : vector<8xf32>
    %1 = vector.multi_reduction <add>, %0, %cst [1] : vector<8x128xf32> to vector<8xf32>
    %2 = vector.shape_cast %1 : vector<8xf32> to vector<8x1xf32>
    %cst_1 = arith.constant 3.125000e-02 : f32
    %3 = vector.broadcast %cst_1 : f32 to vector<8x1xf32>
    %4 = arith.mulf %2, %3 : vector<8x1xf32>
    %5 = tpu.iota {dimensions = array<i32: 1>} : vector<1x128xi32>
    %c32_i32 = arith.constant 32 : i32
    %6 = vector.broadcast %c32_i32 : i32 to vector<1x128xi32>
    %7 = arith.cmpi slt, %5, %6 : vector<1x128xi32>
    %8 = vector.broadcast %4 : vector<8x1xf32> to vector<8x128xf32>
    %9 = arith.subf %0, %8 : vector<8x128xf32>
    %cst_2 = arith.constant 0.000000e+00 : f32
    %10 = vector.shape_cast %7 : vector<1x128xi1> to vector<1x128xi1>
    %11 = vector.broadcast %10 : vector<1x128xi1> to vector<8x128xi1>
    %12 = vector.broadcast %cst_2 : f32 to vector<8x128xf32>
    %13 = arith.select %11, %9, %12 : vector<8x128xi1>, vector<8x128xf32>
    %14 = arith.mulf %13, %13 : vector<8x128xf32>
    %cst_3 = arith.constant dense<0.000000e+00> : vector<8xf32>
    %15 = vector.multi_reduction <add>, %14, %cst_3 [1] : vector<8x128xf32> to vector<8xf32>
    %16 = vector.shape_cast %15 : vector<8xf32> to vector<8x1xf32>
    %cst_4 = arith.constant 0.0322580636 : f32
    %17 = vector.broadcast %cst_4 : f32 to vector<8x1xf32>
    %18 = arith.mulf %16, %17 : vector<8x1xf32>
    %19 = math.sqrt %18 : vector<8x1xf32>
    %cst_5 = arith.constant 9.99999997E-7 : f32
    %20 = vector.broadcast %cst_5 : f32 to vector<8x1xf32>
    %21 = arith.addf %19, %20 : vector<8x1xf32>
    %22 = tpu.reciprocal %21 {approx = true} : vector<8x1xf32> -> vector<8x1xf32>
    %23 = arith.mulf %21, %22 : vector<8x1xf32>
    %cst_6 = arith.constant 2.000000e+00 : f32
    %24 = vector.broadcast %cst_6 : f32 to vector<8x1xf32>
    %25 = arith.subf %24, %23 : vector<8x1xf32>
    %26 = arith.mulf %22, %25 : vector<8x1xf32>
    %27 = vector.broadcast %4 : vector<8x1xf32> to vector<8x128xf32>
    %28 = arith.subf %0, %27 : vector<8x128xf32>
    %29 = vector.broadcast %26 : vector<8x1xf32> to vector<8x128xf32>
    %30 = arith.mulf %28, %29 : vector<8x128xf32>
    %c0_7 = arith.constant 0 : index
    %c0_8 = arith.constant 0 : index
    %31 = vector.load %arg2[%c0_7, %c0_8] : memref<1x128xf32, #tpu.memory_space<vmem>>, vector<1x128xf32>
    %32 = vector.broadcast %31 : vector<1x128xf32> to vector<8x128xf32>
    %33 = arith.mulf %30, %32 : vector<8x128xf32>
    %c0_9 = arith.constant 0 : index
    %c0_10 = arith.constant 0 : index
    %34 = vector.load %arg3[%c0_9, %c0_10] : memref<1x128xf32, #tpu.memory_space<vmem>>, vector<1x128xf32>
    %35 = vector.broadcast %34 : vector<1x128xf32> to vector<8x128xf32>
    %36 = arith.addf %33, %35 : vector<8x128xf32>
    %c0_11 = arith.constant 0 : index
    %c0_12 = arith.constant 0 : index
    %37 = vector.load %arg4[%c0_11, %c0_12] : memref<8x128xf32, #tpu.memory_space<vmem>>, vector<8x128xf32>
    tpu.vector_store %arg4[%c0_11, %c0_12], %36 {strides = array<i32>} : memref<8x128xf32, #tpu.memory_space<vmem>>, vector<8x128xf32>,
    return
  }
  func.func @transform_0(%arg0: i32) -> (i32, i32) {
    %c0_i32 = arith.constant 0 : i32
    %c0_i32_0 = arith.constant 0 : i32
    return %arg0, %c0_i32 : i32, i32
  }
  func.func @transform_1(%arg0: i32) -> (i32, i32) {
    %c0_i32 = arith.constant 0 : i32
    %c0_i32_0 = arith.constant 0 : i32
    %c0_i32_1 = arith.constant 0 : i32
    return %c0_i32, %c0_i32_0 : i32, i32
  }
  func.func @transform_2(%arg0: i32) -> (i32, i32) {
    %c0_i32 = arith.constant 0 : i32
    %c0_i32_0 = arith.constant 0 : i32
    %c0_i32_1 = arith.constant 0 : i32
    return %c0_i32, %c0_i32_0 : i32, i32
  }
  func.func @transform_3(%arg0: i32) -> (i32, i32) {
    %c0_i32 = arith.constant 0 : i32
    %c0_i32_0 = arith.constant 0 : i32
    return %arg0, %c0_i32 : i32, i32
  }
}

</mosaic_0001>

<llo_original>
// kernel: tpu_custom_call.1
$region0: #{tpu_custom_call.1}
  #allocation0 [shape = 'u32[]', space=smem, size = 0x4, offset = 0x4, fixed_abs, tag = 'smem constant byte address 0x4 - core index']
  #allocation1 [shape = 'u32[72,128]{1,0:T(1,128)}', space=vmem, size = 0x9000, scoped, tag = 'internal scratch']
  %s0 = inlined_call_operand.hbm [shape: f32[16,128], index: 0, kind: input, shape index: {}]
  %s1 = inlined_call_operand.hbm [shape: f32[1,128], index: 1, kind: input, shape index: {}]
  %s2 = inlined_call_operand.vmem [shape: f32[1,128], index: 2, kind: input, shape index: {}]
  %s3 = inlined_call_operand.hbm [shape: f32[16,128], index: 3, kind: output, shape index: {}]
  %s4 = sld [smem:[#allocation0]]
  $region53: #{tpu_custom_call.1} parent=0
    _
  %s6 = ssub.s32 1, %s4
  %s7 = scalar_select 0, %s6, %s4
  $region1: #{tpu_custom_call.1} parent=0
    #allocation2 [shape = 'u8[8192]{0}', space=vmem, size = 0x2000, scoped, tag = 'input window, operand 0']
    #allocation3 [shape = 's32[2]{0}', space=sflag, size = 0x8, scoped, tag = 'scoped memory for tpu_custom_call.1']
    #allocation4 [shape = 's32[2]{0}', space=sflag, size = 0x8, scoped, tag = 'scoped memory for tpu_custom_call.1']
    #allocation5 [shape = 'u8[512]{0}', space=vmem, size = 0x400, scoped, tag = 'input window, operand 1, single buffered']
    #allocation6 [shape = 's32[1]{0}', space=sflag, size = 0x4, scoped, tag = 'scoped memory for tpu_custom_call.1']
    #allocation7 [shape = 'u8[8192]{0}', space=vmem, size = 0x2000, scoped, tag = 'output window, operand 0']
    %8 = vsyncpa [#allocation3], 0
    %s9 = scalar_lea.sflag [#allocation3], 1
    %10 = vsyncpa %s9, 0
    %11 = vsyncpa [#allocation6], 0
    %12 = vsyncpa [#allocation4], 0
    %s13 = scalar_lea.sflag [#allocation4], 1
    %14 = vsyncpa %s13, 0
    loop: start=0, step=1, limit=4
    $region2: #{tpu_custom_call.1} parent=1 // loop_pre_header
      _
    $region3: #{tpu_custom_call.1} parent=1 // loop_header
      %s16 = sphi 0, %s20
      %p17 = scmp.ge.s32.totalorder %s16, 4
      %s26 = sphi 0, %s28
      %s29 = sphi 0, %s26
      %s30 = sphi 0, %s29
      %s46 = sphi 0, %s30
      %s50 = sphi 0, %s50
      %s52 = sphi 0, %s50
      %s53 = sphi 0, %s52
      %s67 = sphi 0, %s53
      %s71 = sphi 0, %s71
      %s73 = sphi 0, %s71
      %s74 = sphi 0, %s73
      %s88 = sphi 0, %s74
      %s94 = sphi 0, %s96
      %s97 = sphi 0, %s94
      %s98 = sphi 0, %s97
      %s114 = sphi 0, %s98
    $region4: #{tpu_custom_call.1} parent=1 // loop_header_branch
      %19 = sbr.rel (%p17) target = $region8
    $region5: #{tpu_custom_call.1} parent=1 // loop_body
      %s21 = ssub.s32 %s16, 1
      %s22 = ssub.s32 %s16, 2
      %s23 = sadd.s32 %s16, 1
      %s24 = ssub.s32 %s16, %s23
      %p25 = scmp.eq.s32.totalorder %s24, 0
      %s27 = sadd.s32 %s26, 1
      %s28 = scalar_select %p25, %s26, %s27
      %p31 = pneg %p25
      %p32 = scmp.eq.s32.totalorder %s16, 1
      %p33 = por %p31, %p32
      %p34 = scmp.ne.s32.totalorder %s26, %s29
      %p35 = scmp.eq.s32.totalorder %s16, 0
      %p36 = por %p34, %p35
      %p37 = scmp.ne.s32.totalorder %s26, %s29
      %p38 = scmp.eq.s32.totalorder %s21, 1
      %p39 = por %p37, %p38
      %p40 = scmp.ne.s32.totalorder %s29, %s30
      %p41 = scmp.eq.s32.totalorder %s21, 0
      %p42 = por %p40, %p41
      %p43 = scmp.ne.s32.totalorder %s29, %s30
      %p44 = scmp.eq.s32.totalorder %s22, 1
      %p45 = por %p43, %p44
      %p47 = scmp.ne.s32.totalorder %s30, %s46
      %p48 = scmp.eq.s32.totalorder %s22, 0
      %p49 = por %p47, %p48
      %s51 = sadd.s32 %s50, 1
      %p54 = scmp.eq.s32.totalorder %s16, 1
      %p55 = scmp.ne.s32.totalorder %s50, %s52
      %p56 = scmp.eq.s32.totalorder %s16, 0
      %p57 = por %p55, %p56
      %p58 = scmp.ne.s32.totalorder %s50, %s52
      %p59 = scmp.eq.s32.totalorder %s21, 1
      %p60 = por %p58, %p59
      %p61 = scmp.ne.s32.totalorder %s52, %s53
      %p62 = scmp.eq.s32.totalorder %s21, 0
      %p63 = por %p61, %p62
      %p64 = scmp.ne.s32.totalorder %s52, %s53
      %p65 = scmp.eq.s32.totalorder %s22, 1
      %p66 = por %p64, %p65
      %p68 = scmp.ne.s32.totalorder %s53, %s67
      %p69 = scmp.eq.s32.totalorder %s22, 0
      %p70 = por %p68, %p69
      %s72 = sadd.s32 %s71, 1
      %p75 = scmp.eq.s32.totalorder %s16, 1
      %p76 = scmp.ne.s32.totalorder %s71, %s73
      %p77 = scmp.eq.s32.totalorder %s16, 0
      %p78 = por %p76, %p77
      %p79 = scmp.ne.s32.totalorder %s71, %s73
      %p80 = scmp.eq.s32.totalorder %s21, 1
      %p81 = por %p79, %p80
      %p82 = scmp.ne.s32.totalorder %s73, %s74
      %p83 = scmp.eq.s32.totalorder %s21, 0
      %p84 = por %p82, %p83
      %p85 = scmp.ne.s32.totalorder %s73, %s74
      %p86 = scmp.eq.s32.totalorder %s22, 1
      %p87 = por %p85, %p86
      %p89 = scmp.ne.s32.totalorder %s74, %s88
      %p90 = scmp.eq.s32.totalorder %s22, 0
      %p91 = por %p89, %p90
      %s92 = ssub.s32 %s16, %s23
      %p93 = scmp.eq.s32.totalorder %s92, 0
      %s95 = sadd.s32 %s94, 1
      %s96 = scalar_select %p93, %s94, %s95
      %p99 = pneg %p93
      %p100 = scmp.eq.s32.totalorder %s16, 1
      %p101 = por %p99, %p100
      %p102 = scmp.ne.s32.totalorder %s94, %s97
      %p103 = scmp.eq.s32.totalorder %s16, 0
      %p104 = por %p102, %p103
      %p105 = scmp.ne.s32.totalorder %s94, %s97
      %p106 = scmp.eq.s32.totalorder %s21, 1
      %p107 = por %p105, %p106
      %p108 = scmp.ne.s32.totalorder %s97, %s98
      %p109 = scmp.eq.s32.totalorder %s21, 0
      %p110 = por %p108, %p109
      %p111 = scmp.ne.s32.totalorder %s97, %s98
      %p112 = scmp.eq.s32.totalorder %s22, 1
      %p113 = por %p111, %p112
      %p115 = scmp.ne.s32.totalorder %s98, %s114
      %p116 = scmp.eq.s32.totalorder %s22, 0
      %p117 = por %p115, %p116
      %p118 = scmp.le.s32.totalorder 1, %s16
      %p119 = scmp.lt.s32.totalorder %s16, 3
      %p120 = pnand %p118, %p119
      %p121 = pneg %p120
      // Predicated region
      $region9: #{tpu_custom_call.1} parent=5 // pred_check
        _
      $region10: #{tpu_custom_call.1} parent=5 // pred_check_branch
        %123 = sbr.rel (%p120) target = $region12
      $region11: #{tpu_custom_call.1} parent=5 // pred_region
        %s124 = ssub.s32 %s16, 1
        // Predicated region
        $region13: #{tpu_custom_call.1} parent=11 // pred_check
          %p125 = pneg %p63
        $region14: #{tpu_custom_call.1} parent=11 // pred_check_branch
          %127 = sbr.rel (%p125) target = $region16
        $region15: #{tpu_custom_call.1} parent=11 // pred_region
          %129 = vsyncadd [#allocation6], 0
          %s131 = sshll.u32 %s1, 4
          %s132 = int_to_ptr.hbm [resolvable:$true] %s131
          %s133 = sshll.u32 [#allocation5], 4
          %s134 = int_to_ptr.vmem [resolvable:$true] %s133
          %136 = dma.hbm_to_vmem [thread:$0]  %s132, 16, %s134, [#allocation6]
        $region16: #{tpu_custom_call.1} parent=11 // pred_fallthru
          _
        // Predicated region
        $region17: #{tpu_custom_call.1} parent=11 // pred_check
          %p137 = pneg %p84
        $region18: #{tpu_custom_call.1} parent=11 // pred_check_branch
          %139 = sbr.rel (%p137) target = $region20
        $region19: #{tpu_custom_call.1} parent=11 // pred_region
          _
        $region20: #{tpu_custom_call.1} parent=11 // pred_fallthru
          _
      $region12: #{tpu_custom_call.1} parent=5 // pred_fallthru
        _
      %p140 = scmp.lt.s32.totalorder %s16, 2
      // Predicated region
      $region21: #{tpu_custom_call.1} parent=5 // pred_check
        %p141 = pneg %p140
      $region22: #{tpu_custom_call.1} parent=5 // pred_check_branch
        %143 = sbr.rel (%p141) target = $region24
      $region23: #{tpu_custom_call.1} parent=5 // pred_region
        // Predicated region
        $region25: #{tpu_custom_call.1} parent=23 // pred_check
          %p144 = pneg %p36
        $region26: #{tpu_custom_call.1} parent=23 // pred_check_branch
          %146 = sbr.rel (%p144) target = $region28
        $region27: #{tpu_custom_call.1} parent=23 // pred_region
          %s147 = sand.u32 %s26, 1
          %s148 = scalar_lea.sflag [#allocation3], %s147
          %s149 = sand.u32 %s26, 1
          %s150 = smul.addr %s149, 8
          %s151 = scalar_lea.vmem [#allocation2], %s150
          %153 = vsyncadd %s148, 0
          %s154 = smul.addr %s16, 8
          %s155 = scalar_lea.hbm %s0, %s154
          %s157 = sshll.u32 %s155, 4
          %s158 = int_to_ptr.hbm [resolvable:$true] %s157
          %s159 = sshll.u32 %s151, 4
          %s160 = int_to_ptr.vmem [resolvable:$true] %s159
          %162 = dma.hbm_to_vmem [thread:$0]  %s158, 128, %s160, %s148
        $region28: #{tpu_custom_call.1} parent=23 // pred_fallthru
          _
      $region24: #{tpu_custom_call.1} parent=5 // pred_fallthru
        _
      %p163 = scmp.le.s32.totalorder 1, %s16
      %p164 = scmp.lt.s32.totalorder %s16, 3
      %p165 = pnand %p163, %p164
      %p166 = pneg %p165
      // Predicated region
      $region29: #{tpu_custom_call.1} parent=5 // pred_check
        _
      $region30: #{tpu_custom_call.1} parent=5 // pred_check_branch
        %168 = sbr.rel (%p165) target = $region32
      $region31: #{tpu_custom_call.1} parent=5 // pred_region
        %s169 = ssub.s32 %s16, 1
        %s170 = sand.u32 %s29, 1
        %s171 = scalar_lea.sflag [#allocation3], %s170
        %s172 = sand.u32 %s29, 1
        %s173 = smul.addr %s172, 8
        %s174 = scalar_lea.vmem [#allocation2], %s173
        // Predicated region
        $region33: #{tpu_custom_call.1} parent=31 // pred_check
          %p175 = pneg %p42
        $region34: #{tpu_custom_call.1} parent=31 // pred_check_branch
          %177 = sbr.rel (%p175) target = $region36
        $region35: #{tpu_custom_call.1} parent=31 // pred_region
          %179 = dma.done %s171, 128
        $region36: #{tpu_custom_call.1} parent=31 // pred_fallthru
          _
        // Predicated region
        $region37: #{tpu_custom_call.1} parent=31 // pred_check
          %p180 = pneg %p63
        $region38: #{tpu_custom_call.1} parent=31 // pred_check_branch
          %182 = sbr.rel (%p180) target = $region40
        $region39: #{tpu_custom_call.1} parent=31 // pred_region
          %184 = dma.done [#allocation6], 16
        $region40: #{tpu_custom_call.1} parent=31 // pred_fallthru
          _
        %s185 = sand.u32 %s29, 1
        %s186 = scalar_lea.sflag [#allocation3], %s185
        %s187 = sand.u32 %s29, 1
        %s188 = smul.addr %s187, 8
        %s189 = scalar_lea.vmem [#allocation2], %s188
        %p190 = pneg %p42
        %p191 = pneg %p39
        %p192 = pneg %p63
        %p193 = pneg %p60
        %p194 = pneg %p84
        %p195 = pneg %p81
        %p196 = pneg %p110
        %p197 = pneg %p107
        %s198 = sand.u32 %s97, 1
        %s199 = scalar_lea.sflag [#allocation4], %s198
        %s200 = sand.u32 %s97, 1
        %s201 = smul.addr %s200, 8
        %s202 = scalar_lea.vmem [#allocation7], %s201
        %v203 = vld [vmem:[%s174] sm:$0xff]
        %204 = vadd.xlane.f32.xlu0 %v203
        %v205 = vpop.xlane.xlu0 %204
        %v206 = vmul.f32 %v205, 0.03125
        %v207 = vlaneseq
        %v208 = vand.u32 %v207, 127
        %vm209 = vcmp.lt.s32.totalorder %v208, 32
        %v210 = vsub.f32 %v203, %v206
        %v211 = vsel %vm209, 1, 0
        %vm212 = vcmp.eq.s32.totalorder %v211, 1
        %v213 = vsel %vm212, %v210, 0.0
        %v214 = vmul.f32 %v213, %v213
        %215 = vadd.xlane.f32.xlu0 %v214
        %v216 = vpop.xlane.xlu0 %215
        %v217 = vmul.f32 %v216, 0.032258064
        %v218 = vrsqrt.pop %v217
        %v219 = vmul.f32 %v218, %v217
        %v220 = vmul.f32 %v219, %v218
        %v221 = vmul.f32 0.5, %v220
        %v222 = vsub.f32 1.5, %v221
        %v223 = vmul.f32 %v218, %v222
        %v224 = vmul.f32 %v217, %v223
        %vm225 = vcmp.eq.f32.partialorder %v217, inf
        %v226 = vsel %vm225, %v217, %v224
        %vm227 = vcmp.eq.f32.partialorder %v217, 0.0
        %v228 = vand.u32 %v217, 2147483648
        %v229 = vsel %vm227, %v228, %v226
        %v230 = vadd.f32 %v229, 1e-06
        %v231 = vrcp.pop %v230
        %v232 = vmul.f32 %v230, %v231
        %v233 = vsub.f32 2.0, %v232
        %v234 = vmul.f32 %v231, %v233
        %v235 = vmul.f32 %v210, %v234
        %v236 = vld [vmem:[#allocation5] sm:$0x1]
        %v238 = vperm.slane %v236, 0
        %v240 = vmul.f32 %v235, %v238
        %v241 = vld [vmem:[%s2] sm:$0x1]
        %v243 = vperm.slane %v241, 0
        %v245 = vadd.f32 %v240, %v243
        %246 = vst [vmem:[%s202] sm:$0xff] %v245
        %s247 = sand.u32 %s97, 1
        %s248 = scalar_lea.sflag [#allocation4], %s247
        %s249 = sand.u32 %s97, 1
        %s250 = smul.addr %s249, 8
        %s251 = scalar_lea.vmem [#allocation7], %s250
        // Predicated region
        $region41: #{tpu_custom_call.1} parent=31 // pred_check
          %p252 = pneg %p107
        $region42: #{tpu_custom_call.1} parent=31 // pred_check_branch
          %254 = sbr.rel (%p252) target = $region44
        $region43: #{tpu_custom_call.1} parent=31 // pred_region
          %256 = vsyncadd %s248, 0
          %s257 = smul.addr %s21, 8
          %s258 = scalar_lea.hbm %s3, %s257
          %s260 = sshll.u32 %s251, 4
          %s261 = int_to_ptr.vmem [resolvable:$true] %s260
          %s262 = sshll.u32 %s258, 4
          %s263 = int_to_ptr.hbm [resolvable:$true] %s262
          %265 = dma.vmem_to_hbm [thread:$0]  %s261, 128, %s263, %s248
        $region44: #{tpu_custom_call.1} parent=31 // pred_fallthru
          _
      $region32: #{tpu_custom_call.1} parent=5 // pred_fallthru
        _
      %p266 = scmp.le.s32.totalorder 2, %s16
      // Predicated region
      $region45: #{tpu_custom_call.1} parent=5 // pred_check
        %p267 = pneg %p266
      $region46: #{tpu_custom_call.1} parent=5 // pred_check_branch
        %269 = sbr.rel (%p267) target = $region48
      $region47: #{tpu_custom_call.1} parent=5 // pred_region
        %s270 = ssub.s32 %s16, 2
        // Predicated region
        $region49: #{tpu_custom_call.1} parent=47 // pred_check
          %p271 = pneg %p113
        $region50: #{tpu_custom_call.1} parent=47 // pred_check_branch
          %273 = sbr.rel (%p271) target = $region52
        $region51: #{tpu_custom_call.1} parent=47 // pred_region
          %s274 = sand.u32 %s98, 1
          %s275 = scalar_lea.sflag [#allocation4], %s274
          %s276 = sand.u32 %s98, 1
          %s277 = smul.addr %s276, 8
          %s278 = scalar_lea.vmem [#allocation7], %s277
          %280 = dma.done %s275, 128
        $region52: #{tpu_custom_call.1} parent=47 // pred_fallthru
          _
      $region48: #{tpu_custom_call.1} parent=5 // pred_fallthru
        _
    $region6: #{tpu_custom_call.1} parent=1 // loop_footer
      %s20 = sadd.s32 1, %s16
    $region7: #{tpu_custom_call.1} parent=1 // loop_footer_branch
      %15 = sbr.rel target = $region3
    $region8: #{tpu_custom_call.1} parent=1 // loop_exit
      _
    %281 = vsyncpa [#allocation3], 1
    %s282 = scalar_lea.sflag [#allocation3], 1
    %283 = vsyncpa %s282, 1
    %284 = vsyncpa [#allocation6], 1
    %285 = vsyncpa [#allocation4], 1
    %s286 = scalar_lea.sflag [#allocation4], 1
    %287 = vsyncpa %s286, 1

</llo_original>
